<compile_context>
chip_gen: v7x
topology: tpu7x:2x2x1
jax: 0.10.0
libtpu: 0.0.40
codegen_flags: <defaults>
</compile_context>

<pallas_src>
import math

import jax
import jax.numpy as jnp
from jax.experimental import pallas as pl
from jax.experimental.pallas import tpu as pltpu


# --------------------------------------------------------------------------
# PE table construction (replicates the PyTorch __init__ exactly, in f32,
# then casts ONCE to the requested dtype -- outside the forward hot path).
# --------------------------------------------------------------------------
def make_pos_emb(n_seq: int, model_dim: int, dtype=jnp.float32) -> jnp.ndarray:
    assert model_dim % 2 == 0, "model_dim must be even (matches the PyTorch module)"
    number = jnp.arange(0, n_seq, dtype=jnp.float32).reshape(-1, 1)          # (n_seq, 1)
    division_term = jnp.exp(
        math.log(10000.0) * (jnp.arange(0, model_dim, 2, dtype=jnp.float32) / model_dim)
    )                                                                         # (model_dim//2,)
    angles = number / division_term                                           # (n_seq, model_dim//2)
    pos_emb = jnp.zeros((n_seq, model_dim), dtype=jnp.float32)
    pos_emb = pos_emb.at[:, 0::2].set(jnp.sin(angles))
    pos_emb = pos_emb.at[:, 1::2].set(jnp.cos(angles))
    return pos_emb[None, :, :].astype(dtype)                                  # (1, n_seq, model_dim)


# --------------------------------------------------------------------------
# Tiling helpers
# --------------------------------------------------------------------------
def _divisors(n: int):
    ds = set()
    i = 1
    while i * i <= n:
        if n % i == 0:
            ds.add(i)
            ds.add(n // i)
        i += 1
    return sorted(ds)


def _default_block_bytes() -> int:
    """Generation-aware target block size (kept inside default scoped VMEM
    with double-buffered x + out + pe blocks)."""
    try:
        kind = jax.devices()[0].device_kind.lower()
    except Exception:
        return 2 * 1024 * 1024
    if "v5 lite" in kind or "v5e" in kind or "v5litepod" in kind:
        return 2 * 1024 * 1024          # v5e: 16 MiB default scoped VMEM
    if "v6" in kind or "trillium" in kind or "v7" in kind:
        return 4 * 1024 * 1024          # v6e/v7x: 32 MiB default scoped VMEM
    return 2 * 1024 * 1024


def _sublane_pack(itemsize: int) -> int:
    """Native sublane packing: 8 rows for 4-byte, 16 for 2-byte, 32 for 1-byte."""
    return {4: 8, 2: 16, 1: 32}.get(itemsize, 8)


def _choose_tiles(batch: int, fused: int, itemsize: int,
                  target_block_bytes: int,
                  max_block_bytes: int = 8 * 1024 * 1024):
    """Pick (tb, tc) tile sizes for a (batch, fused) array, or None if no
    legal blocking fits inside `max_block_bytes`.

    Constraints honored:
      * tb divides batch and is a multiple of the dtype's sublane packing,
        OR equals batch (full extent).
      * tc divides fused and is a multiple of 128, OR equals fused.
      * tb * tc * itemsize stays near `target_block_bytes` and never exceeds
        `max_block_bytes` (hard cap -> graceful fallback instead of VMEM OOM).
    """
    sub = _sublane_pack(itemsize)
    target_elems = max(128, target_block_bytes // itemsize)

    # Sublane (batch-row) tile: native packing if possible, else full extent.
    tb = sub if (batch >= sub and batch % sub == 0) else batch

    # Lane (fused seq*dim) tile.
    col_budget = max(128, target_elems // max(tb, 1))
    if fused <= col_budget or fused % 128 != 0:
        tc = fused
    else:
        tc = 128
        for d in _divisors(fused // 128):
            cand = d * 128
            if cand <= col_budget and cand > tc:
                tc = cand

    # If a single block already spans full rows, fold more batch rows per
    # block to amortize the ~0.35 us fixed cost of each grid step.
    if tc == fused:
        best_tb = tb
        for d in _divisors(batch):
            if (d % sub == 0 or d == batch) and d * tc <= target_elems and d > best_tb:
                best_tb = d
        tb = best_tb

    # Hard VMEM cap: the only oversize cases are forced full-extent blocks
    # (batch % sub != 0 and/or fused % 128 != 0) -- nothing smaller is legal.
    if tb * tc * itemsize > max_block_bytes:
        return None
    return tb, tc


# --------------------------------------------------------------------------
# Kernel + forward
# --------------------------------------------------------------------------
def _pe_add_kernel(x_ref, pe_ref, o_ref):
    # x_ref: (TB, TC) activation tile; pe_ref: (1, TC) PE tile (broadcast over rows).
    o_ref[...] = (x_ref[...] + pe_ref[...]).astype(o_ref.dtype)


def positional_encoding_forward(x: jnp.ndarray, pos_emb: jnp.ndarray,
                                target_block_bytes: int | None = None,
                                donate_x: bool = False) -> jnp.ndarray:
    """x: (batch, n_seq, model_dim); pos_emb: (1, n_seq, model_dim).

    No dtype casts happen here: pass pos_emb already in the desired dtype
    (make_pos_emb(..., dtype=x.dtype)).  Output dtype = promote(x, pos_emb),
    matching PyTorch's promotion when the table is left in f32.
    """
    batch, n_seq, model_dim = x.shape
    assert pos_emb.shape == (1, n_seq, model_dim)
    if target_block_bytes is None:
        target_block_bytes = _default_block_bytes()

    out_dtype = jnp.result_type(x.dtype, pos_emb.dtype)
    fused = n_seq * model_dim
    x2 = x.reshape(batch, fused)
    pe2 = pos_emb.reshape(1, fused)

    tiles = _choose_tiles(batch, fused, jnp.dtype(out_dtype).itemsize, target_block_bytes)
    if tiles is None:
        # No legal (8/16/32,128)-aligned blocking fits the VMEM cap (odd shapes):
        # fall back to a plain XLA stream add (same HBM traffic, still BW-bound).
        return (x2 + pe2).astype(out_dtype).reshape(batch, n_seq, model_dim)
    tb, tc = tiles

    # Grid order: fused-blocks OUTER, batch-blocks INNER so the PE block index
    # is constant across consecutive steps (no PE re-fetch per batch stripe),
    # and the (usually larger) fused axis is first for v7x megacore sharding.
    grid = (fused // tc, batch // tb)

    alias = {0: 0} if (donate_x and out_dtype == x.dtype) else {}

    out2 = pl.pallas_call(
        _pe_add_kernel,
        out_shape=jax.ShapeDtypeStruct((batch, fused), out_dtype),
        grid_spec=pltpu.PrefetchScalarGridSpec(
            num_scalar_prefetch=0,
            grid=grid,
            in_specs=[
                pl.BlockSpec((tb, tc), lambda c, b: (b, c)),   # x tile
                pl.BlockSpec((1, tc), lambda c, b: (0, c)),    # PE tile (constant over inner axis)
            ],
            out_specs=pl.BlockSpec((tb, tc), lambda c, b: (b, c)),
        ),
        compiler_params=pltpu.CompilerParams(
            dimension_semantics=("parallel", "parallel"),
        ),
        input_output_aliases=alias,
    )(x2, pe2)

    return out2.reshape(batch, n_seq, model_dim)


if __name__ == "__main__":
    # --- small demo shape (matches the module's expected layout) ---
    batch, n_seq, model_dim = 2, 8, 32
    key = jax.random.PRNGKey(0)
    x = jax.random.normal(key, (batch, n_seq, model_dim), dtype=jnp.float32)
    pos_emb = make_pos_emb(n_seq, model_dim, dtype=x.dtype)   # cast hoisted out of forward

    out = positional_encoding_forward(x, pos_emb)
    out = jax.block_until_ready(out)

    ref = x + pos_emb
    assert out.shape == (batch, n_seq, model_dim)
    assert out.dtype == ref.dtype
    assert jnp.allclose(out, ref, atol=1e-6), "mismatch vs reference (demo shape)"

    # --- second check: force a multi-block grid to exercise the tiling path ---
    b2, s2, d2 = 16, 64, 64
    x2 = jax.random.normal(jax.random.PRNGKey(0), (b2, s2, d2), dtype=jnp.float32)
    pe2 = make_pos_emb(s2, d2, dtype=x2.dtype)
    out2 = positional_encoding_forward(x2, pe2, target_block_bytes=4096)
    out2 = jax.block_until_ready(out2)
    assert jnp.allclose(out2, x2 + pe2, atol=1e-6), "mismatch vs reference (tiled shape)"

    print("KERNEL_OK")
</pallas_src>

<mosaic_0001>
module attributes {stable_mosaic.version = 11 : i64} {
  func.func @_pe_add_kernel(%arg0: i32, %arg1: i32, %arg2: memref<2x256xf32, #tpu.memory_space<vmem>>, %arg3: memref<1x256xf32, #tpu.memory_space<vmem>>, %arg4: memref<2x256xf32, #tpu.memory_space<vmem>>) attributes {dimension_semantics = [#tpu.dimension_semantics<parallel>, #tpu.dimension_semantics<parallel>], iteration_bounds = array<i64: 1, 1>, scalar_prefetch = 0 : i64, scratch_operands = 0 : i64, tpu.core_type = #tpu.core_type<tc>, window_params = [{transform_indices = @transform_0, window_bounds = array<i64: 2, 256>}, {transform_indices = @transform_1, window_bounds = array<i64: 1, 256>}, {transform_indices = @transform_2, window_bounds = array<i64: 2, 256>}]} {
    %c0 = arith.constant 0 : index
    %c0_0 = arith.constant 0 : index
    %0 = vector.load %arg2[%c0, %c0_0] : memref<2x256xf32, #tpu.memory_space<vmem>>, vector<2x256xf32>
    %c0_1 = arith.constant 0 : index
    %c0_2 = arith.constant 0 : index
    %1 = vector.load %arg3[%c0_1, %c0_2] : memref<1x256xf32, #tpu.memory_space<vmem>>, vector<1x256xf32>
    %2 = vector.broadcast %1 : vector<1x256xf32> to vector<2x256xf32>
    %3 = arith.addf %0, %2 : vector<2x256xf32>
    %c0_3 = arith.constant 0 : index
    %c0_4 = arith.constant 0 : index
    %4 = vector.load %arg4[%c0_3, %c0_4] : memref<2x256xf32, #tpu.memory_space<vmem>>, vector<2x256xf32>
    tpu.vector_store %arg4[%c0_3, %c0_4], %3 {strides = array<i32>} : memref<2x256xf32, #tpu.memory_space<vmem>>, vector<2x256xf32>,
    return
  }
  func.func @transform_0(%arg0: i32, %arg1: i32) -> (i32, i32) {
    %c0_i32 = arith.constant 0 : i32
    return %arg1, %arg0 : i32, i32
  }
  func.func @transform_1(%arg0: i32, %arg1: i32) -> (i32, i32) {
    %c0_i32 = arith.constant 0 : i32
    %c0_i32_0 = arith.constant 0 : i32
    return %c0_i32, %arg0 : i32, i32
  }
  func.func @transform_2(%arg0: i32, %arg1: i32) -> (i32, i32) {
    %c0_i32 = arith.constant 0 : i32
    return %arg1, %arg0 : i32, i32
  }
}

</mosaic_0001>

<llo_original>
// kernel: tpu_custom_call.1
$region0: #{tpu_custom_call.1}
  #allocation0 [shape = 'u32[]', space=smem, size = 0x4, offset = 0x4, fixed_abs, tag = 'smem constant byte address 0x4 - core index']
  #allocation1 [shape = 'u32[144,128]{1,0:T(1,128)}', space=vmem, size = 0x12000, scoped, tag = 'internal scratch']
  %s0 = inlined_call_operand.hbm [shape: f32[2,256], index: 0, kind: input, shape index: {}]
  %s1 = inlined_call_operand.vmem [shape: f32[1,256], index: 1, kind: input, shape index: {}]
  %s2 = inlined_call_operand.hbm [shape: f32[2,256], index: 2, kind: output, shape index: {}]
  %s3 = sld [smem:[#allocation0]]
  $region22: #{tpu_custom_call.1} parent=0
    _
  %s5 = ssub.s32 1, %s3
  %s6 = scalar_select 0, %s5, %s3
  $region1: #{tpu_custom_call.1} parent=0
    #allocation2 [shape = 'u8[2048]{0}', space=vmem, size = 0x800, scoped, tag = 'input window, operand 0, single buffered']
    #allocation3 [shape = 's32[1]{0}', space=sflag, size = 0x4, scoped, tag = 'scoped memory for tpu_custom_call.1']
    #allocation4 [shape = 's32[1]{0}', space=sflag, size = 0x4, scoped, tag = 'scoped memory for tpu_custom_call.1']
    #allocation5 [shape = 'u8[2048]{0}', space=vmem, size = 0x800, scoped, tag = 'output window, operand 0, single buffered']
    %7 = vsyncpa [#allocation3], 0
    %8 = vsyncpa [#allocation4], 0
    // Predicated region
    $region2: #{tpu_custom_call.1} parent=1 // pred_check
      _
    $region3: #{tpu_custom_call.1} parent=1 // pred_check_branch
      %10 = sbr.rel (0) target = $region5
    $region4: #{tpu_custom_call.1} parent=1 // pred_region
      %s12 = ssub.s32 64, 64
      %13 = vsyncadd [#allocation3], %s12
      %s15 = sshll.u32 [#allocation2], 4
      %s16 = int_to_ptr.vmem [resolvable:$true] %s15
      %18 = dma.hbm_to_vmem [thread:$0]  %s0, 64, %s16, [#allocation3]
    $region5: #{tpu_custom_call.1} parent=1 // pred_fallthru
      _
    // Predicated region
    $region6: #{tpu_custom_call.1} parent=1 // pred_check
      _
    $region7: #{tpu_custom_call.1} parent=1 // pred_check_branch
      %20 = sbr.rel (0) target = $region9
    $region8: #{tpu_custom_call.1} parent=1 // pred_region
      _
    $region9: #{tpu_custom_call.1} parent=1 // pred_fallthru
      _
    // Predicated region
    $region10: #{tpu_custom_call.1} parent=1 // pred_check
      _
    $region11: #{tpu_custom_call.1} parent=1 // pred_check_branch
      %22 = sbr.rel (0) target = $region13
    $region12: #{tpu_custom_call.1} parent=1 // pred_region
      %23 = dma.done [#allocation3], 64
    $region13: #{tpu_custom_call.1} parent=1 // pred_fallthru
      _
    %v24 = vld [vmem:[#allocation2] sm:$0xf]
    %v25 = vld [vmem:[%s1] sm:$0x3]
    %v27 = vlaneseq
    %v28 = vshrl.u32 %v27, 7
    %v29 = vsub.s32 0, %v28
    %v30 = vrot.slane %v25, %v29
    %v31 = vlaneseq
    %v32 = vshrl.u32 %v31, 7
    %v33 = vsub.s32 1, %v32
    %v34 = vrot.slane %v25, %v33
    %v35 = vcombine.low %v30, %v34
    %v37 = vunpack.c.l.s4 1983009808
    %v38 = vunpack.c.0.s8 %v37
    %v39 = vlaneseq
    %v40 = vshrl.u32 %v39, 7
    %v41 = vsub.s32 %v38, %v40
    %v42 = vrot.slane %v35, %v41
    %v44 = vadd.f32 %v24, %v42
    %45 = vst [vmem:[#allocation5] sm:$0xf] %v44
    // Predicated region
    $region14: #{tpu_custom_call.1} parent=1 // pred_check
      _
    $region15: #{tpu_custom_call.1} parent=1 // pred_check_branch
      %47 = sbr.rel (0) target = $region17
    $region16: #{tpu_custom_call.1} parent=1 // pred_region
      %s49 = ssub.s32 64, 64
      %50 = vsyncadd [#allocation4], %s49
      %s52 = sshll.u32 [#allocation5], 4
      %s53 = int_to_ptr.vmem [resolvable:$true] %s52
      %55 = dma.vmem_to_hbm [thread:$0]  %s53, 64, %s2, [#allocation4]
    $region17: #{tpu_custom_call.1} parent=1 // pred_fallthru
      _
    // Predicated region
    $region18: #{tpu_custom_call.1} parent=1 // pred_check
      _
    $region19: #{tpu_custom_call.1} parent=1 // pred_check_branch
      %57 = sbr.rel (0) target = $region21
    $region20: #{tpu_custom_call.1} parent=1 // pred_region
      %58 = dma.done [#allocation4], 64
    $region21: #{tpu_custom_call.1} parent=1 // pred_fallthru
      _
    %59 = vsyncpa [#allocation3], 1
    %60 = vsyncpa [#allocation4], 1

</llo_original>
